<compile_context>
chip_gen: v7x
topology: tpu7x:2x2x1
jax: 0.10.0
libtpu: 0.0.40
codegen_flags: <defaults>
</compile_context>

<pallas_src>
import jax
import jax.numpy as jnp
from jax import lax
from jax.experimental import pallas as pl
from jax.experimental.pallas import tpu as pltpu

STRIDE = 9 + 11  # = 20, matches x[:, ::9+11] in the PyTorch code


def _regularizer_cdist_kernel(packed_ref, out_ref):
    # packed_ref: (4, B, P) f32 in VMEM with rows [xi, xj, yi, yj], P = N*N.
    # out_ref:    (1, 1) f32 in VMEM.
    xi = packed_ref[0]
    xj = packed_ref[1]
    yi = packed_ref[2]
    yj = packed_ref[3]

    dx = xi - xj
    dy = yi - yj
    d2 = dx * dx + dy * dy                      # squared pairwise distances, (B, P)

    # Symmetric matrix with zero diagonal => min over nonzero entries of the
    # full (flattened) matrix equals min over the strict upper triangle.
    masked = jnp.where(d2 > 0.0, d2, jnp.inf)

    m = jnp.min(masked, axis=0, keepdims=True)  # (1, P) sublane reduce
    m = jnp.min(m, axis=1, keepdims=True)       # (1, 1) lane reduce
    # 5e-5 / sqrt(min_sq) == 5e-5 * rsqrt(min_sq); single (1,1) EUP op.
    out_ref[...] = (5e-5 * lax.rsqrt(m)).astype(jnp.float32)


def spike_search_loss(x: jax.Array, Y: jax.Array, initial_grid_xy=None) -> jax.Array:
    """Pallas implementation of SpikeSearchLoss.forward (regularizer term)."""
    del Y, initial_grid_xy  # unused by regularizer_cdist / forward result
    x = x.astype(jnp.float32)

    # Glue: strided extraction of spike (x, y) coordinates, as in PyTorch.
    px = x[:, ::STRIDE]       # (B, N)
    py = x[:, 1::STRIDE]      # (B, N)
    # PyTorch would silently pair mismatched counts if D % 20 != 0; we require
    # equal counts so stacking is well defined.
    assert px.shape == py.shape, (px.shape, py.shape)
    B, N = px.shape

    # Layout plumbing (lane-dense pair axis): materialize all ordered pairs
    # (i, j) as flat length-N*N vectors so the kernel's last dim is >= 128.
    xi = jnp.repeat(px, N, axis=1)    # element k -> px[:, k // N]
    xj = jnp.tile(px, (1, N))         # element k -> px[:, k %  N]
    yi = jnp.repeat(py, N, axis=1)
    yj = jnp.tile(py, (1, N))
    packed = jnp.stack([xi, xj, yi, yj], axis=0)   # (4, B, N*N), one DMA

    out = pl.pallas_call(
        _regularizer_cdist_kernel,
        out_shape=jax.ShapeDtypeStruct((1, 1), jnp.float32),
        in_specs=[pl.BlockSpec(memory_space=pltpu.VMEM)],
        out_specs=pl.BlockSpec(memory_space=pltpu.VMEM),
    )(packed)
    return out[0, 0]


def _reference(x: jax.Array) -> jax.Array:
    """Pure-JAX reference mirroring the PyTorch regularizer_cdist exactly."""
    px = x[:, ::STRIDE]
    py = x[:, 1::STRIDE]
    pos = jnp.stack((px, py), axis=-1)                      # (B, N, 2)
    diff = pos[:, :, None, :] - pos[:, None, :, :]
    dist = jnp.sqrt(jnp.sum(diff * diff, axis=-1))          # (B, N, N)
    N = pos.shape[1]
    row = jnp.arange(N)[:, None]
    col = jnp.arange(N)[None, :]
    keep = (col > row)[None, :, :] & (dist != 0.0)
    return 5e-05 / jnp.min(jnp.where(keep, dist, jnp.inf))


if __name__ == "__main__":
    key = jax.random.PRNGKey(0)
    B, D = 2, 320                      # -> N = 16 spike positions per batch row
    kx, ky = jax.random.split(key)
    x = jax.random.uniform(kx, (B, D), dtype=jnp.float32, minval=0.0, maxval=1.0)
    Y = jax.random.normal(ky, (B, 8), dtype=jnp.float32)    # unused by regularizer

    loss = spike_search_loss(x, Y)
    jax.block_until_ready(loss)

    ref = _reference(x)
    assert jnp.allclose(loss, ref, rtol=1e-5, atol=1e-8), (loss, ref)
    print("KERNEL_OK")
</pallas_src>

<mosaic_0001>
module attributes {stable_mosaic.version = 11 : i64} {
  func.func @_regularizer_cdist_kernel(%arg0: memref<4x2x256xf32, #tpu.memory_space<vmem>>, %arg1: memref<1x1xf32, #tpu.memory_space<vmem>>) attributes {dimension_semantics = [], scalar_prefetch = 0 : i64, scratch_operands = 0 : i64, tpu.core_type = #tpu.core_type<tc>} {
    %c0 = arith.constant 0 : index
    %c0_0 = arith.constant 0 : index
    %c0_1 = arith.constant 0 : index
    %0 = vector.load %arg0[%c0, %c0_0, %c0_1] : memref<4x2x256xf32, #tpu.memory_space<vmem>>, vector<1x2x256xf32>
    %1 = vector.shape_cast %0 : vector<1x2x256xf32> to vector<2x256xf32>
    %c1 = arith.constant 1 : index
    %c0_2 = arith.constant 0 : index
    %c0_3 = arith.constant 0 : index
    %2 = vector.load %arg0[%c1, %c0_2, %c0_3] : memref<4x2x256xf32, #tpu.memory_space<vmem>>, vector<1x2x256xf32>
    %3 = vector.shape_cast %2 : vector<1x2x256xf32> to vector<2x256xf32>
    %c2 = arith.constant 2 : index
    %c0_4 = arith.constant 0 : index
    %c0_5 = arith.constant 0 : index
    %4 = vector.load %arg0[%c2, %c0_4, %c0_5] : memref<4x2x256xf32, #tpu.memory_space<vmem>>, vector<1x2x256xf32>
    %5 = vector.shape_cast %4 : vector<1x2x256xf32> to vector<2x256xf32>
    %c3 = arith.constant 3 : index
    %c0_6 = arith.constant 0 : index
    %c0_7 = arith.constant 0 : index
    %6 = vector.load %arg0[%c3, %c0_6, %c0_7] : memref<4x2x256xf32, #tpu.memory_space<vmem>>, vector<1x2x256xf32>
    %7 = vector.shape_cast %6 : vector<1x2x256xf32> to vector<2x256xf32>
    %8 = arith.subf %1, %3 : vector<2x256xf32>
    %9 = arith.subf %5, %7 : vector<2x256xf32>
    %10 = arith.mulf %8, %8 : vector<2x256xf32>
    %11 = arith.mulf %9, %9 : vector<2x256xf32>
    %12 = arith.addf %10, %11 : vector<2x256xf32>
    %cst = arith.constant 0.000000e+00 : f32
    %13 = vector.broadcast %cst : f32 to vector<2x256xf32>
    %14 = arith.cmpf ogt, %12, %13 : vector<2x256xf32>
    %cst_8 = arith.constant 0x7F800000 : f32
    %15 = vector.broadcast %cst_8 : f32 to vector<2x256xf32>
    %16 = arith.select %14, %12, %15 : vector<2x256xi1>, vector<2x256xf32>
    %cst_9 = arith.constant dense<0x7F800000> : vector<256xf32>
    %17 = vector.multi_reduction <minimumf>, %16, %cst_9 [0] : vector<2x256xf32> to vector<256xf32>
    %18 = vector.shape_cast %17 : vector<256xf32> to vector<1x256xf32>
    %cst_10 = arith.constant dense<0x7F800000> : vector<1xf32>
    %19 = vector.multi_reduction <minimumf>, %18, %cst_10 [1] : vector<1x256xf32> to vector<1xf32>
    %20 = vector.shape_cast %19 : vector<1xf32> to vector<1x1xf32>
    %21 = math.rsqrt %20 : vector<1x1xf32>
    %cst_11 = arith.constant 5.000000e-05 : f32
    %22 = vector.broadcast %cst_11 : f32 to vector<1x1xf32>
    %23 = arith.mulf %22, %21 : vector<1x1xf32>
    %c0_12 = arith.constant 0 : index
    %c0_13 = arith.constant 0 : index
    %24 = vector.load %arg1[%c0_12, %c0_13] : memref<1x1xf32, #tpu.memory_space<vmem>>, vector<1x1xf32>
    tpu.vector_store %arg1[%c0_12, %c0_13], %23 {strides = array<i32>} : memref<1x1xf32, #tpu.memory_space<vmem>>, vector<1x1xf32>,
    return
  }
}

</mosaic_0001>

<llo_original>
// kernel: tpu_custom_call.1
$region0: #{tpu_custom_call.1}
  #allocation0 [shape = 'u32[]', space=smem, size = 0x4, offset = 0x4, fixed_abs, tag = 'smem constant byte address 0x4 - core index']
  #allocation1 [shape = 'u32[144,128]{1,0:T(1,128)}', space=vmem, size = 0x12000, scoped, tag = 'internal scratch']
  %s0 = inlined_call_operand.hbm [shape: f32[4,2,256], index: 0, kind: input, shape index: {}]
  %s1 = inlined_call_operand.hbm [shape: f32[1,1], index: 1, kind: output, shape index: {}]
  %s2 = sld [smem:[#allocation0]]
  $region18: #{tpu_custom_call.1} parent=0
    _
  %s4 = ssub.s32 1, %s2
  %s5 = scalar_select 0, %s4, %s2
  $region1: #{tpu_custom_call.1} parent=0
    #allocation2 [shape = 'u8[8192]{0}', space=vmem, size = 0x2000, scoped, tag = 'input window, operand 0, single buffered']
    #allocation3 [shape = 's32[1]{0}', space=sflag, size = 0x4, scoped, tag = 'scoped memory for tpu_custom_call.1']
    #allocation4 [shape = 's32[1]{0}', space=sflag, size = 0x4, scoped, tag = 'scoped memory for tpu_custom_call.1']
    #allocation5 [shape = 'u8[512]{0}', space=vmem, size = 0x400, scoped, tag = 'output window, operand 0, single buffered']
    %6 = vsyncpa [#allocation3], 0
    %7 = vsyncpa [#allocation4], 0
    // Predicated region
    $region2: #{tpu_custom_call.1} parent=1 // pred_check
      _
    $region3: #{tpu_custom_call.1} parent=1 // pred_check_branch
      %9 = sbr.rel (0) target = $region5
    $region4: #{tpu_custom_call.1} parent=1 // pred_region
      %s11 = ssub.s32 256, 256
      %12 = vsyncadd [#allocation3], %s11
      %s13 = sshll.u32 [#allocation2], 4
      %s14 = int_to_ptr.vmem [resolvable:$true] %s13
      %19 = dma.hbm_to_vmem [thread:$0]  %s0, 256, %s14, [#allocation3], 64, 64, 4
    $region5: #{tpu_custom_call.1} parent=1 // pred_fallthru
      _
    // Predicated region
    $region6: #{tpu_custom_call.1} parent=1 // pred_check
      _
    $region7: #{tpu_custom_call.1} parent=1 // pred_check_branch
      %21 = sbr.rel (0) target = $region9
    $region8: #{tpu_custom_call.1} parent=1 // pred_region
      %22 = dma.done [#allocation3], 256
    $region9: #{tpu_custom_call.1} parent=1 // pred_fallthru
      _
    %v23 = vld [vmem:[#allocation2] sm:$0xf]
    %s24 = scalar_lea.vmem [#allocation2], 4
    %v25 = vld [vmem:[%s24] sm:$0xf]
    %s26 = scalar_lea.vmem [#allocation2], 8
    %v27 = vld [vmem:[%s26] sm:$0xf]
    %s28 = scalar_lea.vmem [#allocation2], 12
    %v29 = vld [vmem:[%s28] sm:$0xf]
    %v30 = vsub.f32 %v23, %v25
    %v31 = vsub.f32 %v27, %v29
    %v32 = vmul.f32 %v30, %v30
    %v33 = vmul.f32 %v31, %v31
    %v34 = vadd.f32 %v32, %v33
    %vm35 = vcmp.gt.f32.partialorder %v34, 0.0
    %v36 = vsel %vm35, %v34, inf
    %v39 = vunpack.c.l.s4 1983009808
    %v40 = vunpack.c.0.s8 %v39
    %v41 = vlaneseq
    %v42 = vshrl.u32 %v41, 7
    %v43 = vsub.s32 %v40, %v42
    %v44 = vrot.slane %v36, %v43
    %v45 = vcombine.high %v44, %v44
    %vm48 = vcmask 1041408
    %v49 = vsel %vm48, %v44, inf
    %v50 = vrot.slane %v49, 4
    %v51 = vmin.f32 %v49, %v50
    %v52 = vrot.slane %v51, 2
    %v53 = vmin.f32 %v51, %v52
    %v54 = vrot.slane %v53, 1
    %v55 = vmin.f32 %v53, %v54
    %v56 = vsel %vm48, %v45, inf
    %v57 = vrot.slane %v56, 4
    %v58 = vmin.f32 %v56, %v57
    %v59 = vrot.slane %v58, 2
    %v60 = vmin.f32 %v58, %v59
    %v61 = vrot.slane %v60, 1
    %v62 = vmin.f32 %v60, %v61
    %v63 = vmin.f32 %v55, %v62
    %64 = vmin.xlane.f32.xlu0 %v63
    %v65 = vpop.xlane.xlu0 %64
    %v66 = vrsqrt.pop %v65
    %v67 = vmul.f32 %v66, 5e-05
    %vm68 = vcmask 0
    %69 = vst.msk [vmem:[#allocation5] sm:$0x1] %vm68, %v67
    // Predicated region
    $region10: #{tpu_custom_call.1} parent=1 // pred_check
      _
    $region11: #{tpu_custom_call.1} parent=1 // pred_check_branch
      %71 = sbr.rel (0) target = $region13
    $region12: #{tpu_custom_call.1} parent=1 // pred_region
      %s73 = ssub.s32 16, 16
      %74 = vsyncadd [#allocation4], %s73
      %s76 = sshll.u32 [#allocation5], 4
      %s77 = int_to_ptr.vmem [resolvable:$true] %s76
      %79 = dma.vmem_to_hbm [thread:$0]  %s77, 16, %s1, [#allocation4]
    $region13: #{tpu_custom_call.1} parent=1 // pred_fallthru
      _
    // Predicated region
    $region14: #{tpu_custom_call.1} parent=1 // pred_check
      _
    $region15: #{tpu_custom_call.1} parent=1 // pred_check_branch
      %81 = sbr.rel (0) target = $region17
    $region16: #{tpu_custom_call.1} parent=1 // pred_region
      %82 = dma.done [#allocation4], 16
    $region17: #{tpu_custom_call.1} parent=1 // pred_fallthru
      _
    %83 = vsyncpa [#allocation3], 1
    %84 = vsyncpa [#allocation4], 1

</llo_original>
